<compile_context>
chip_gen: v5e
topology: v5e:2x2
jax: 0.10.0
libtpu: 0.0.40
codegen_flags: <defaults>
</compile_context>

<pallas_src>
import functools
import math

import jax
import jax.numpy as jnp
from jax.experimental import pallas as pl
from jax.experimental.pallas import tpu as pltpu


def actor_net_kernel(x_ref, w1_ref, b1_ref, w2_ref, b2_ref, out_ref, *,
                     fc2_on_vpu=False):
    x = x_ref[...]                                  # (TB, S) f32
    w1 = w1_ref[...]                                # (S, H)  f32
    S = x.shape[1]

    # ---- fc1 + ReLU --------------------------------------------------------
    if S <= 8:
        # Tiny contraction dim: a few broadcast-FMAs on the VPU beat a padded
        # (S -> 128) systolic pass plus MXU result-FIFO pop latency.
        h = x[:, 0:1] * w1[0:1, :]
        for s in range(1, S):
            h = h + x[:, s:s + 1] * w1[s:s + 1, :]
    else:
        h = jnp.dot(x, w1, preferred_element_type=jnp.float32)
    h = jnp.maximum(h + b1_ref[...], 0.0)           # broadcast (1, H)

    # ---- fc2 ---------------------------------------------------------------
    w2 = w2_ref[...]                                # (H, A_pad)
    if fc2_on_vpu:
        # Latency path (few rows): H unrolled broadcast-FMAs instead of MXU warm-up.
        H = h.shape[1]
        logits = h[:, 0:1] * w2[0:1, :]
        for k in range(1, H):
            logits = logits + h[:, k:k + 1] * w2[k:k + 1, :]
    else:
        logits = jnp.dot(h, w2, preferred_element_type=jnp.float32)  # (TB, A_pad)
    logits = logits + b2_ref[...]                   # padded columns get -1e30 bias

    # ---- softmax along the action dim (padded cols underflow to exactly 0) --
    m = jnp.max(logits, axis=1, keepdims=True)
    e = jnp.exp(logits - m)
    denom = jnp.sum(e, axis=1, keepdims=True)
    out_ref[...] = (e * pl.reciprocal(denom, approx=False)).astype(out_ref.dtype)


def _round_up(x, m):
    return ((x + m - 1) // m) * m


@functools.partial(jax.jit, static_argnames=("batch_tile", "small_batch_threshold"))
def actor_net_forward(state, w1, b1, w2, b2, *, batch_tile=2048,
                      small_batch_threshold=256):
    """state: (B, S) f32; w1: (S, H); b1: (H,); w2: (H, A); b2: (A,) -> probs (B, A)."""
    assert batch_tile % 8 == 0, "batch_tile must be a multiple of 8 (sublane tiling)"
    B, S = state.shape
    H = w1.shape[1]
    A = w2.shape[1]

    # Lane-dense output: pad the action dim to a multiple of 128. Padded weight
    # columns are 0 and padded biases are -1e30, so softmax on the real columns is
    # unchanged and the padded probabilities are exactly 0 (at least one real logit
    # is always finite, so max() never picks the pad value).
    A_pad = max(128, _round_up(A, 128))
    w2p = jnp.pad(w2, ((0, 0), (0, A_pad - A)))
    b2p = jnp.pad(b2, (0, A_pad - A), constant_values=-1e30)

    b1_2d = b1.reshape(1, H)
    b2_2d = b2p.reshape(1, A_pad)

    if B <= small_batch_threshold:
        # Latency path: gridless call, whole-array VMEM blocks, no pipelining
        # machinery. For very small batches also keep fc2 off the MXU.
        kernel = functools.partial(actor_net_kernel, fc2_on_vpu=(B <= 8))
        out = pl.pallas_call(
            kernel,
            out_shape=jax.ShapeDtypeStruct((B, A_pad), jnp.float32),
            in_specs=[pl.BlockSpec(memory_space=pltpu.MemorySpace.VMEM)] * 5,
            out_specs=pl.BlockSpec(memory_space=pltpu.MemorySpace.VMEM),
        )(state, w1, b1_2d, w2p, b2_2d)
    else:
        # Throughput path: tile the batch. No explicit row padding — the grid is
        # cdiv(B, TB) and Pallas masks writes of the ragged tail block (garbage
        # rows are per-row independent through matmul/softmax, so they never
        # contaminate real rows). TB is chosen so there are always >= 2 blocks,
        # letting the two v7x TensorCores split the batch ("parallel" axis);
        # harmless on single-TC v5e/v6e. Weights/biases stay resident in VMEM
        # (constant index_maps).
        TB = min(batch_tile, max(8, _round_up(-(-B // 2), 8)))
        out = pl.pallas_call(
            functools.partial(actor_net_kernel, fc2_on_vpu=False),
            out_shape=jax.ShapeDtypeStruct((B, A_pad), jnp.float32),
            grid=(pl.cdiv(B, TB),),
            in_specs=[
                pl.BlockSpec((TB, S), lambda i: (i, 0)),
                pl.BlockSpec((S, H), lambda i: (0, 0)),
                pl.BlockSpec((1, H), lambda i: (0, 0)),
                pl.BlockSpec((H, A_pad), lambda i: (0, 0)),
                pl.BlockSpec((1, A_pad), lambda i: (0, 0)),
            ],
            out_specs=pl.BlockSpec((TB, A_pad), lambda i: (i, 0)),
            compiler_params=pltpu.CompilerParams(
                dimension_semantics=("parallel",)),
        )(state, w1, b1_2d, w2p, b2_2d)

    # Single fused slice under jit (drops the zero-probability padded columns).
    return out[:, :A]


def init_linear_params(key, in_features, out_features):
    """Deterministic init mimicking torch.nn.Linear defaults: U(-1/sqrt(in), 1/sqrt(in))."""
    kw, kb = jax.random.split(key)
    bound = 1.0 / math.sqrt(in_features)
    w = jax.random.uniform(kw, (in_features, out_features), jnp.float32,
                           minval=-bound, maxval=bound)
    b = jax.random.uniform(kb, (out_features,), jnp.float32,
                           minval=-bound, maxval=bound)
    return w, b


def _reference(state, w1, b1, w2, b2):
    h = jnp.maximum(state @ w1 + b1, 0.0)
    return jax.nn.softmax(h @ w2 + b2, axis=1)


if __name__ == "__main__":
    # Discretized-Pendulum PPO actor: state_dim=3 (cos θ, sin θ, θ̇), hidden=32, actions=11.
    state_dim, hidden_dim, action_dim = 3, 32, 11

    key = jax.random.PRNGKey(0)
    k_small, k_large, k_fc1, k_fc2 = jax.random.split(key, 4)

    w1, b1 = init_linear_params(k_fc1, state_dim, hidden_dim)
    w2, b2 = init_linear_params(k_fc2, hidden_dim, action_dim)

    # --- small batch: gridless latency path (fc1 + fc2 on VPU) ----------------
    batch = 8
    state = jax.random.normal(k_small, (batch, state_dim), jnp.float32)
    probs = jax.block_until_ready(actor_net_forward(state, w1, b1, w2, b2))
    ref = _reference(state, w1, b1, w2, b2)
    assert probs.shape == (batch, action_dim)
    assert jnp.allclose(jnp.sum(probs, axis=1), 1.0, atol=1e-5)
    assert jnp.allclose(probs, ref, atol=1e-5)

    # --- large batch: batch-tiled "parallel" grid path with a ragged tail -----
    big_batch = 1037  # deliberately not a tile multiple, to exercise tail masking
    big_state = jax.random.normal(k_large, (big_batch, state_dim), jnp.float32)
    big_probs = jax.block_until_ready(
        actor_net_forward(big_state, w1, b1, w2, b2))
    big_ref = _reference(big_state, w1, b1, w2, b2)
    assert big_probs.shape == (big_batch, action_dim)
    assert jnp.allclose(jnp.sum(big_probs, axis=1), 1.0, atol=1e-5)
    assert jnp.allclose(big_probs, big_ref, atol=1e-5)

    print("KERNEL_OK")
</pallas_src>

<mosaic_0001>
module attributes {stable_mosaic.version = 11 : i64} {
  func.func @actor_net_kernel(%arg0: memref<8x3xf32, #tpu.memory_space<vmem>>, %arg1: memref<3x32xf32, #tpu.memory_space<vmem>>, %arg2: memref<1x32xf32, #tpu.memory_space<vmem>>, %arg3: memref<32x128xf32, #tpu.memory_space<vmem>>, %arg4: memref<1x128xf32, #tpu.memory_space<vmem>>, %arg5: memref<8x128xf32, #tpu.memory_space<vmem>>) attributes {dimension_semantics = [], scalar_prefetch = 0 : i64, scratch_operands = 0 : i64, tpu.core_type = #tpu.core_type<tc>} {
    %c0 = arith.constant 0 : index
    %c0_0 = arith.constant 0 : index
    %0 = vector.load %arg0[%c0, %c0_0] : memref<8x3xf32, #tpu.memory_space<vmem>>, vector<8x3xf32>
    %c0_1 = arith.constant 0 : index
    %c0_2 = arith.constant 0 : index
    %1 = vector.load %arg1[%c0_1, %c0_2] : memref<3x32xf32, #tpu.memory_space<vmem>>, vector<3x32xf32>
    %2 = vector.extract_strided_slice %0 {offsets = [0, 0], sizes = [8, 1], strides = [1, 1]} : vector<8x3xf32> to vector<8x1xf32>
    %3 = vector.extract_strided_slice %1 {offsets = [0, 0], sizes = [1, 32], strides = [1, 1]} : vector<3x32xf32> to vector<1x32xf32>
    %4 = vector.broadcast %2 : vector<8x1xf32> to vector<8x32xf32>
    %5 = vector.broadcast %3 : vector<1x32xf32> to vector<8x32xf32>
    %6 = arith.mulf %4, %5 : vector<8x32xf32>
    %7 = vector.extract_strided_slice %0 {offsets = [0, 1], sizes = [8, 1], strides = [1, 1]} : vector<8x3xf32> to vector<8x1xf32>
    %8 = vector.extract_strided_slice %1 {offsets = [1, 0], sizes = [1, 32], strides = [1, 1]} : vector<3x32xf32> to vector<1x32xf32>
    %9 = vector.broadcast %7 : vector<8x1xf32> to vector<8x32xf32>
    %10 = vector.broadcast %8 : vector<1x32xf32> to vector<8x32xf32>
    %11 = arith.mulf %9, %10 : vector<8x32xf32>
    %12 = arith.addf %6, %11 : vector<8x32xf32>
    %13 = vector.extract_strided_slice %0 {offsets = [0, 2], sizes = [8, 1], strides = [1, 1]} : vector<8x3xf32> to vector<8x1xf32>
    %14 = vector.extract_strided_slice %1 {offsets = [2, 0], sizes = [1, 32], strides = [1, 1]} : vector<3x32xf32> to vector<1x32xf32>
    %15 = vector.broadcast %13 : vector<8x1xf32> to vector<8x32xf32>
    %16 = vector.broadcast %14 : vector<1x32xf32> to vector<8x32xf32>
    %17 = arith.mulf %15, %16 : vector<8x32xf32>
    %18 = arith.addf %12, %17 : vector<8x32xf32>
    %c0_3 = arith.constant 0 : index
    %c0_4 = arith.constant 0 : index
    %19 = vector.load %arg2[%c0_3, %c0_4] : memref<1x32xf32, #tpu.memory_space<vmem>>, vector<1x32xf32>
    %20 = vector.broadcast %19 : vector<1x32xf32> to vector<8x32xf32>
    %21 = arith.addf %18, %20 : vector<8x32xf32>
    %cst = arith.constant 0.000000e+00 : f32
    %22 = vector.broadcast %cst : f32 to vector<8x32xf32>
    %23 = arith.maximumf %21, %22 : vector<8x32xf32>
    %c0_5 = arith.constant 0 : index
    %c0_6 = arith.constant 0 : index
    %24 = vector.load %arg3[%c0_5, %c0_6] : memref<32x128xf32, #tpu.memory_space<vmem>>, vector<32x128xf32>
    %25 = vector.extract_strided_slice %23 {offsets = [0, 0], sizes = [8, 1], strides = [1, 1]} : vector<8x32xf32> to vector<8x1xf32>
    %26 = vector.extract_strided_slice %24 {offsets = [0, 0], sizes = [1, 128], strides = [1, 1]} : vector<32x128xf32> to vector<1x128xf32>
    %27 = vector.broadcast %25 : vector<8x1xf32> to vector<8x128xf32>
    %28 = vector.broadcast %26 : vector<1x128xf32> to vector<8x128xf32>
    %29 = arith.mulf %27, %28 : vector<8x128xf32>
    %30 = vector.extract_strided_slice %23 {offsets = [0, 1], sizes = [8, 1], strides = [1, 1]} : vector<8x32xf32> to vector<8x1xf32>
    %31 = vector.extract_strided_slice %24 {offsets = [1, 0], sizes = [1, 128], strides = [1, 1]} : vector<32x128xf32> to vector<1x128xf32>
    %32 = vector.broadcast %30 : vector<8x1xf32> to vector<8x128xf32>
    %33 = vector.broadcast %31 : vector<1x128xf32> to vector<8x128xf32>
    %34 = arith.mulf %32, %33 : vector<8x128xf32>
    %35 = arith.addf %29, %34 : vector<8x128xf32>
    %36 = vector.extract_strided_slice %23 {offsets = [0, 2], sizes = [8, 1], strides = [1, 1]} : vector<8x32xf32> to vector<8x1xf32>
    %37 = vector.extract_strided_slice %24 {offsets = [2, 0], sizes = [1, 128], strides = [1, 1]} : vector<32x128xf32> to vector<1x128xf32>
    %38 = vector.broadcast %36 : vector<8x1xf32> to vector<8x128xf32>
    %39 = vector.broadcast %37 : vector<1x128xf32> to vector<8x128xf32>
    %40 = arith.mulf %38, %39 : vector<8x128xf32>
    %41 = arith.addf %35, %40 : vector<8x128xf32>
    %42 = vector.extract_strided_slice %23 {offsets = [0, 3], sizes = [8, 1], strides = [1, 1]} : vector<8x32xf32> to vector<8x1xf32>
    %43 = vector.extract_strided_slice %24 {offsets = [3, 0], sizes = [1, 128], strides = [1, 1]} : vector<32x128xf32> to vector<1x128xf32>
    %44 = vector.broadcast %42 : vector<8x1xf32> to vector<8x128xf32>
    %45 = vector.broadcast %43 : vector<1x128xf32> to vector<8x128xf32>
    %46 = arith.mulf %44, %45 : vector<8x128xf32>
    %47 = arith.addf %41, %46 : vector<8x128xf32>
    %48 = vector.extract_strided_slice %23 {offsets = [0, 4], sizes = [8, 1], strides = [1, 1]} : vector<8x32xf32> to vector<8x1xf32>
    %49 = vector.extract_strided_slice %24 {offsets = [4, 0], sizes = [1, 128], strides = [1, 1]} : vector<32x128xf32> to vector<1x128xf32>
    %50 = vector.broadcast %48 : vector<8x1xf32> to vector<8x128xf32>
    %51 = vector.broadcast %49 : vector<1x128xf32> to vector<8x128xf32>
    %52 = arith.mulf %50, %51 : vector<8x128xf32>
    %53 = arith.addf %47, %52 : vector<8x128xf32>
    %54 = vector.extract_strided_slice %23 {offsets = [0, 5], sizes = [8, 1], strides = [1, 1]} : vector<8x32xf32> to vector<8x1xf32>
    %55 = vector.extract_strided_slice %24 {offsets = [5, 0], sizes = [1, 128], strides = [1, 1]} : vector<32x128xf32> to vector<1x128xf32>
    %56 = vector.broadcast %54 : vector<8x1xf32> to vector<8x128xf32>
    %57 = vector.broadcast %55 : vector<1x128xf32> to vector<8x128xf32>
    %58 = arith.mulf %56, %57 : vector<8x128xf32>
    %59 = arith.addf %53, %58 : vector<8x128xf32>
    %60 = vector.extract_strided_slice %23 {offsets = [0, 6], sizes = [8, 1], strides = [1, 1]} : vector<8x32xf32> to vector<8x1xf32>
    %61 = vector.extract_strided_slice %24 {offsets = [6, 0], sizes = [1, 128], strides = [1, 1]} : vector<32x128xf32> to vector<1x128xf32>
    %62 = vector.broadcast %60 : vector<8x1xf32> to vector<8x128xf32>
    %63 = vector.broadcast %61 : vector<1x128xf32> to vector<8x128xf32>
    %64 = arith.mulf %62, %63 : vector<8x128xf32>
    %65 = arith.addf %59, %64 : vector<8x128xf32>
    %66 = vector.extract_strided_slice %23 {offsets = [0, 7], sizes = [8, 1], strides = [1, 1]} : vector<8x32xf32> to vector<8x1xf32>
    %67 = vector.extract_strided_slice %24 {offsets = [7, 0], sizes = [1, 128], strides = [1, 1]} : vector<32x128xf32> to vector<1x128xf32>
    %68 = vector.broadcast %66 : vector<8x1xf32> to vector<8x128xf32>
    %69 = vector.broadcast %67 : vector<1x128xf32> to vector<8x128xf32>
    %70 = arith.mulf %68, %69 : vector<8x128xf32>
    %71 = arith.addf %65, %70 : vector<8x128xf32>
    %72 = vector.extract_strided_slice %23 {offsets = [0, 8], sizes = [8, 1], strides = [1, 1]} : vector<8x32xf32> to vector<8x1xf32>
    %73 = vector.extract_strided_slice %24 {offsets = [8, 0], sizes = [1, 128], strides = [1, 1]} : vector<32x128xf32> to vector<1x128xf32>
    %74 = vector.broadcast %72 : vector<8x1xf32> to vector<8x128xf32>
    %75 = vector.broadcast %73 : vector<1x128xf32> to vector<8x128xf32>
    %76 = arith.mulf %74, %75 : vector<8x128xf32>
    %77 = arith.addf %71, %76 : vector<8x128xf32>
    %78 = vector.extract_strided_slice %23 {offsets = [0, 9], sizes = [8, 1], strides = [1, 1]} : vector<8x32xf32> to vector<8x1xf32>
    %79 = vector.extract_strided_slice %24 {offsets = [9, 0], sizes = [1, 128], strides = [1, 1]} : vector<32x128xf32> to vector<1x128xf32>
    %80 = vector.broadcast %78 : vector<8x1xf32> to vector<8x128xf32>
    %81 = vector.broadcast %79 : vector<1x128xf32> to vector<8x128xf32>
    %82 = arith.mulf %80, %81 : vector<8x128xf32>
    %83 = arith.addf %77, %82 : vector<8x128xf32>
    %84 = vector.extract_strided_slice %23 {offsets = [0, 10], sizes = [8, 1], strides = [1, 1]} : vector<8x32xf32> to vector<8x1xf32>
    %85 = vector.extract_strided_slice %24 {offsets = [10, 0], sizes = [1, 128], strides = [1, 1]} : vector<32x128xf32> to vector<1x128xf32>
    %86 = vector.broadcast %84 : vector<8x1xf32> to vector<8x128xf32>
    %87 = vector.broadcast %85 : vector<1x128xf32> to vector<8x128xf32>
    %88 = arith.mulf %86, %87 : vector<8x128xf32>
    %89 = arith.addf %83, %88 : vector<8x128xf32>
    %90 = vector.extract_strided_slice %23 {offsets = [0, 11], sizes = [8, 1], strides = [1, 1]} : vector<8x32xf32> to vector<8x1xf32>
    %91 = vector.extract_strided_slice %24 {offsets = [11, 0], sizes = [1, 128], strides = [1, 1]} : vector<32x128xf32> to vector<1x128xf32>
    %92 = vector.broadcast %90 : vector<8x1xf32> to vector<8x128xf32>
    %93 = vector.broadcast %91 : vector<1x128xf32> to vector<8x128xf32>
    %94 = arith.mulf %92, %93 : vector<8x128xf32>
    %95 = arith.addf %89, %94 : vector<8x128xf32>
    %96 = vector.extract_strided_slice %23 {offsets = [0, 12], sizes = [8, 1], strides = [1, 1]} : vector<8x32xf32> to vector<8x1xf32>
    %97 = vector.extract_strided_slice %24 {offsets = [12, 0], sizes = [1, 128], strides = [1, 1]} : vector<32x128xf32> to vector<1x128xf32>
    %98 = vector.broadcast %96 : vector<8x1xf32> to vector<8x128xf32>
    %99 = vector.broadcast %97 : vector<1x128xf32> to vector<8x128xf32>
    %100 = arith.mulf %98, %99 : vector<8x128xf32>
    %101 = arith.addf %95, %100 : vector<8x128xf32>
    %102 = vector.extract_strided_slice %23 {offsets = [0, 13], sizes = [8, 1], strides = [1, 1]} : vector<8x32xf32> to vector<8x1xf32>
    %103 = vector.extract_strided_slice %24 {offsets = [13, 0], sizes = [1, 128], strides = [1, 1]} : vector<32x128xf32> to vector<1x128xf32>
    %104 = vector.broadcast %102 : vector<8x1xf32> to vector<8x128xf32>
    %105 = vector.broadcast %103 : vector<1x128xf32> to vector<8x128xf32>
    %106 = arith.mulf %104, %105 : vector<8x128xf32>
    %107 = arith.addf %101, %106 : vector<8x128xf32>
    %108 = vector.extract_strided_slice %23 {offsets = [0, 14], sizes = [8, 1], strides = [1, 1]} : vector<8x32xf32> to vector<8x1xf32>
    %109 = vector.extract_strided_slice %24 {offsets = [14, 0], sizes = [1, 128], strides = [1, 1]} : vector<32x128xf32> to vector<1x128xf32>
    %110 = vector.broadcast %108 : vector<8x1xf32> to vector<8x128xf32>
    %111 = vector.broadcast %109 : vector<1x128xf32> to vector<8x128xf32>
    %112 = arith.mulf %110, %111 : vector<8x128xf32>
    %113 = arith.addf %107, %112 : vector<8x128xf32>
    %114 = vector.extract_strided_slice %23 {offsets = [0, 15], sizes = [8, 1], strides = [1, 1]} : vector<8x32xf32> to vector<8x1xf32>
    %115 = vector.extract_strided_slice %24 {offsets = [15, 0], sizes = [1, 128], strides = [1, 1]} : vector<32x128xf32> to vector<1x128xf32>
    %116 = vector.broadcast %114 : vector<8x1xf32> to vector<8x128xf32>
    %117 = vector.broadcast %115 : vector<1x128xf32> to vector<8x128xf32>
    %118 = arith.mulf %116, %117 : vector<8x128xf32>
    %119 = arith.addf %113, %118 : vector<8x128xf32>
    %120 = vector.extract_strided_slice %23 {offsets = [0, 16], sizes = [8, 1], strides = [1, 1]} : vector<8x32xf32> to vector<8x1xf32>
    %121 = vector.extract_strided_slice %24 {offsets = [16, 0], sizes = [1, 128], strides = [1, 1]} : vector<32x128xf32> to vector<1x128xf32>
    %122 = vector.broadcast %120 : vector<8x1xf32> to vector<8x128xf32>
    %123 = vector.broadcast %121 : vector<1x128xf32> to vector<8x128xf32>
    %124 = arith.mulf %122, %123 : vector<8x128xf32>
    %125 = arith.addf %119, %124 : vector<8x128xf32>
    %126 = vector.extract_strided_slice %23 {offsets = [0, 17], sizes = [8, 1], strides = [1, 1]} : vector<8x32xf32> to vector<8x1xf32>
    %127 = vector.extract_strided_slice %24 {offsets = [17, 0], sizes = [1, 128], strides = [1, 1]} : vector<32x128xf32> to vector<1x128xf32>
    %128 = vector.broadcast %126 : vector<8x1xf32> to vector<8x128xf32>
    %129 = vector.broadcast %127 : vector<1x128xf32> to vector<8x128xf32>
    %130 = arith.mulf %128, %129 : vector<8x128xf32>
    %131 = arith.addf %125, %130 : vector<8x128xf32>
    %132 = vector.extract_strided_slice %23 {offsets = [0, 18], sizes = [8, 1], strides = [1, 1]} : vector<8x32xf32> to vector<8x1xf32>
    %133 = vector.extract_strided_slice %24 {offsets = [18, 0], sizes = [1, 128], strides = [1, 1]} : vector<32x128xf32> to vector<1x128xf32>
    %134 = vector.broadcast %132 : vector<8x1xf32> to vector<8x128xf32>
    %135 = vector.broadcast %133 : vector<1x128xf32> to vector<8x128xf32>
    %136 = arith.mulf %134, %135 : vector<8x128xf32>
    %137 = arith.addf %131, %136 : vector<8x128xf32>
    %138 = vector.extract_strided_slice %23 {offsets = [0, 19], sizes = [8, 1], strides = [1, 1]} : vector<8x32xf32> to vector<8x1xf32>
    %139 = vector.extract_strided_slice %24 {offsets = [19, 0], sizes = [1, 128], strides = [1, 1]} : vector<32x128xf32> to vector<1x128xf32>
    %140 = vector.broadcast %138 : vector<8x1xf32> to vector<8x128xf32>
    %141 = vector.broadcast %139 : vector<1x128xf32> to vector<8x128xf32>
    %142 = arith.mulf %140, %141 : vector<8x128xf32>
    %143 = arith.addf %137, %142 : vector<8x128xf32>
    %144 = vector.extract_strided_slice %23 {offsets = [0, 20], sizes = [8, 1], strides = [1, 1]} : vector<8x32xf32> to vector<8x1xf32>
    %145 = vector.extract_strided_slice %24 {offsets = [20, 0], sizes = [1, 128], strides = [1, 1]} : vector<32x128xf32> to vector<1x128xf32>
    %146 = vector.broadcast %144 : vector<8x1xf32> to vector<8x128xf32>
    %147 = vector.broadcast %145 : vector<1x128xf32> to vector<8x128xf32>
    %148 = arith.mulf %146, %147 : vector<8x128xf32>
    %149 = arith.addf %143, %148 : vector<8x128xf32>
    %150 = vector.extract_strided_slice %23 {offsets = [0, 21], sizes = [8, 1], strides = [1, 1]} : vector<8x32xf32> to vector<8x1xf32>
    %151 = vector.extract_strided_slice %24 {offsets = [21, 0], sizes = [1, 128], strides = [1, 1]} : vector<32x128xf32> to vector<1x128xf32>
    %152 = vector.broadcast %150 : vector<8x1xf32> to vector<8x128xf32>
    %153 = vector.broadcast %151 : vector<1x128xf32> to vector<8x128xf32>
    %154 = arith.mulf %152, %153 : vector<8x128xf32>
    %155 = arith.addf %149, %154 : vector<8x128xf32>
    %156 = vector.extract_strided_slice %23 {offsets = [0, 22], sizes = [8, 1], strides = [1, 1]} : vector<8x32xf32> to vector<8x1xf32>
    %157 = vector.extract_strided_slice %24 {offsets = [22, 0], sizes = [1, 128], strides = [1, 1]} : vector<32x128xf32> to vector<1x128xf32>
    %158 = vector.broadcast %156 : vector<8x1xf32> to vector<8x128xf32>
    %159 = vector.broadcast %157 : vector<1x128xf32> to vector<8x128xf32>
    %160 = arith.mulf %158, %159 : vector<8x128xf32>
    %161 = arith.addf %155, %160 : vector<8x128xf32>
    %162 = vector.extract_strided_slice %23 {offsets = [0, 23], sizes = [8, 1], strides = [1, 1]} : vector<8x32xf32> to vector<8x1xf32>
    %163 = vector.extract_strided_slice %24 {offsets = [23, 0], sizes = [1, 128], strides = [1, 1]} : vector<32x128xf32> to vector<1x128xf32>
    %164 = vector.broadcast %162 : vector<8x1xf32> to vector<8x128xf32>
    %165 = vector.broadcast %163 : vector<1x128xf32> to vector<8x128xf32>
    %166 = arith.mulf %164, %165 : vector<8x128xf32>
    %167 = arith.addf %161, %166 : vector<8x128xf32>
    %168 = vector.extract_strided_slice %23 {offsets = [0, 24], sizes = [8, 1], strides = [1, 1]} : vector<8x32xf32> to vector<8x1xf32>
    %169 = vector.extract_strided_slice %24 {offsets = [24, 0], sizes = [1, 128], strides = [1, 1]} : vector<32x128xf32> to vector<1x128xf32>
    %170 = vector.broadcast %168 : vector<8x1xf32> to vector<8x128xf32>
    %171 = vector.broadcast %169 : vector<1x128xf32> to vector<8x128xf32>
    %172 = arith.mulf %170, %171 : vector<8x128xf32>
    %173 = arith.addf %167, %172 : vector<8x128xf32>
    %174 = vector.extract_strided_slice %23 {offsets = [0, 25], sizes = [8, 1], strides = [1, 1]} : vector<8x32xf32> to vector<8x1xf32>
    %175 = vector.extract_strided_slice %24 {offsets = [25, 0], sizes = [1, 128], strides = [1, 1]} : vector<32x128xf32> to vector<1x128xf32>
    %176 = vector.broadcast %174 : vector<8x1xf32> to vector<8x128xf32>
    %177 = vector.broadcast %175 : vector<1x128xf32> to vector<8x128xf32>
    %178 = arith.mulf %176, %177 : vector<8x128xf32>
    %179 = arith.addf %173, %178 : vector<8x128xf32>
    %180 = vector.extract_strided_slice %23 {offsets = [0, 26], sizes = [8, 1], strides = [1, 1]} : vector<8x32xf32> to vector<8x1xf32>
    %181 = vector.extract_strided_slice %24 {offsets = [26, 0], sizes = [1, 128], strides = [1, 1]} : vector<32x128xf32> to vector<1x128xf32>
    %182 = vector.broadcast %180 : vector<8x1xf32> to vector<8x128xf32>
    %183 = vector.broadcast %181 : vector<1x128xf32> to vector<8x128xf32>
    %184 = arith.mulf %182, %183 : vector<8x128xf32>
    %185 = arith.addf %179, %184 : vector<8x128xf32>
    %186 = vector.extract_strided_slice %23 {offsets = [0, 27], sizes = [8, 1], strides = [1, 1]} : vector<8x32xf32> to vector<8x1xf32>
    %187 = vector.extract_strided_slice %24 {offsets = [27, 0], sizes = [1, 128], strides = [1, 1]} : vector<32x128xf32> to vector<1x128xf32>
    %188 = vector.broadcast %186 : vector<8x1xf32> to vector<8x128xf32>
    %189 = vector.broadcast %187 : vector<1x128xf32> to vector<8x128xf32>
    %190 = arith.mulf %188, %189 : vector<8x128xf32>
    %191 = arith.addf %185, %190 : vector<8x128xf32>
    %192 = vector.extract_strided_slice %23 {offsets = [0, 28], sizes = [8, 1], strides = [1, 1]} : vector<8x32xf32> to vector<8x1xf32>
    %193 = vector.extract_strided_slice %24 {offsets = [28, 0], sizes = [1, 128], strides = [1, 1]} : vector<32x128xf32> to vector<1x128xf32>
    %194 = vector.broadcast %192 : vector<8x1xf32> to vector<8x128xf32>
    %195 = vector.broadcast %193 : vector<1x128xf32> to vector<8x128xf32>
    %196 = arith.mulf %194, %195 : vector<8x128xf32>
    %197 = arith.addf %191, %196 : vector<8x128xf32>
    %198 = vector.extract_strided_slice %23 {offsets = [0, 29], sizes = [8, 1], strides = [1, 1]} : vector<8x32xf32> to vector<8x1xf32>
    %199 = vector.extract_strided_slice %24 {offsets = [29, 0], sizes = [1, 128], strides = [1, 1]} : vector<32x128xf32> to vector<1x128xf32>
    %200 = vector.broadcast %198 : vector<8x1xf32> to vector<8x128xf32>
    %201 = vector.broadcast %199 : vector<1x128xf32> to vector<8x128xf32>
    %202 = arith.mulf %200, %201 : vector<8x128xf32>
    %203 = arith.addf %197, %202 : vector<8x128xf32>
    %204 = vector.extract_strided_slice %23 {offsets = [0, 30], sizes = [8, 1], strides = [1, 1]} : vector<8x32xf32> to vector<8x1xf32>
    %205 = vector.extract_strided_slice %24 {offsets = [30, 0], sizes = [1, 128], strides = [1, 1]} : vector<32x128xf32> to vector<1x128xf32>
    %206 = vector.broadcast %204 : vector<8x1xf32> to vector<8x128xf32>
    %207 = vector.broadcast %205 : vector<1x128xf32> to vector<8x128xf32>
    %208 = arith.mulf %206, %207 : vector<8x128xf32>
    %209 = arith.addf %203, %208 : vector<8x128xf32>
    %210 = vector.extract_strided_slice %23 {offsets = [0, 31], sizes = [8, 1], strides = [1, 1]} : vector<8x32xf32> to vector<8x1xf32>
    %211 = vector.extract_strided_slice %24 {offsets = [31, 0], sizes = [1, 128], strides = [1, 1]} : vector<32x128xf32> to vector<1x128xf32>
    %212 = vector.broadcast %210 : vector<8x1xf32> to vector<8x128xf32>
    %213 = vector.broadcast %211 : vector<1x128xf32> to vector<8x128xf32>
    %214 = arith.mulf %212, %213 : vector<8x128xf32>
    %215 = arith.addf %209, %214 : vector<8x128xf32>
    %c0_7 = arith.constant 0 : index
    %c0_8 = arith.constant 0 : index
    %216 = vector.load %arg4[%c0_7, %c0_8] : memref<1x128xf32, #tpu.memory_space<vmem>>, vector<1x128xf32>
    %217 = vector.broadcast %216 : vector<1x128xf32> to vector<8x128xf32>
    %218 = arith.addf %215, %217 : vector<8x128xf32>
    %cst_9 = arith.constant dense<0xFF800000> : vector<8xf32>
    %219 = vector.multi_reduction <maximumf>, %218, %cst_9 [1] : vector<8x128xf32> to vector<8xf32>
    %220 = vector.shape_cast %219 : vector<8xf32> to vector<8x1xf32>
    %221 = vector.broadcast %220 : vector<8x1xf32> to vector<8x128xf32>
    %222 = arith.subf %218, %221 : vector<8x128xf32>
    %223 = math.exp %222 : vector<8x128xf32>
    %cst_10 = arith.constant dense<0.000000e+00> : vector<8xf32>
    %224 = vector.multi_reduction <add>, %223, %cst_10 [1] : vector<8x128xf32> to vector<8xf32>
    %225 = vector.shape_cast %224 : vector<8xf32> to vector<8x1xf32>
    %226 = tpu.reciprocal %225 : vector<8x1xf32> -> vector<8x1xf32>
    %227 = vector.broadcast %226 : vector<8x1xf32> to vector<8x128xf32>
    %228 = arith.mulf %223, %227 : vector<8x128xf32>
    %c0_11 = arith.constant 0 : index
    %c0_12 = arith.constant 0 : index
    %229 = vector.load %arg5[%c0_11, %c0_12] : memref<8x128xf32, #tpu.memory_space<vmem>>, vector<8x128xf32>
    tpu.vector_store %arg5[%c0_11, %c0_12], %228 {strides = array<i32>} : memref<8x128xf32, #tpu.memory_space<vmem>>, vector<8x128xf32>,
    return
  }
}

</mosaic_0001>

<llo_original>
// kernel: actor_net_forward.1
$region0: #{actor_net_forward.1}
  #allocation0 [shape = 'u32[]', space=smem, size = 0x4, offset = 0x4, fixed_abs, tag = 'smem constant byte address 0x4 - core index']
  #allocation1 [shape = 'u32[72,128]{1,0:T(1,128)}', space=vmem, size = 0x9000, scoped, tag = 'internal scratch']
  %s0 = inlined_call_operand.vmem [shape: f32[8,3], index: 0, kind: input, shape index: {}]
  %s1 = inlined_call_operand.vmem [shape: f32[3,32], index: 1, kind: input, shape index: {}]
  %s2 = inlined_call_operand.vmem [shape: f32[1,32], index: 2, kind: input, shape index: {}]
  %s3 = inlined_call_operand.vmem [shape: f32[32,128], index: 3, kind: input, shape index: {}]
  %s4 = inlined_call_operand.vmem [shape: f32[1,128], index: 4, kind: input, shape index: {}]
  %s5 = inlined_call_operand.hbm [shape: f32[8,128], index: 5, kind: output, shape index: {}]
  %s6 = sld [smem:[#allocation0]]
  $region30: #{actor_net_forward.1} parent=0
    _
  %s8 = ssub.s32 1, %s6
  %s9 = scalar_select 0, %s8, %s6
  $region1: #{actor_net_forward.1} parent=0
    #allocation2 [shape = 'u8[4096]{0}', space=vmem, size = 0x1000, scoped, tag = 'output window, operand 0, single buffered']
    #allocation3 [shape = 's32[1]{0}', space=sflag, size = 0x4, scoped, tag = 'scoped memory for actor_net_forward.1']
    %10 = vsyncpa [#allocation3], 0
    // Predicated region
    $region2: #{actor_net_forward.1} parent=1 // pred_check
      _
    $region3: #{actor_net_forward.1} parent=1 // pred_check_branch
      %12 = sbr.rel (0) target = $region5
    $region4: #{actor_net_forward.1} parent=1 // pred_region
      _
    $region5: #{actor_net_forward.1} parent=1 // pred_fallthru
      _
    // Predicated region
    $region6: #{actor_net_forward.1} parent=1 // pred_check
      _
    $region7: #{actor_net_forward.1} parent=1 // pred_check_branch
      %14 = sbr.rel (0) target = $region9
    $region8: #{actor_net_forward.1} parent=1 // pred_region
      _
    $region9: #{actor_net_forward.1} parent=1 // pred_fallthru
      _
    // Predicated region
    $region10: #{actor_net_forward.1} parent=1 // pred_check
      _
    $region11: #{actor_net_forward.1} parent=1 // pred_check_branch
      %16 = sbr.rel (0) target = $region13
    $region12: #{actor_net_forward.1} parent=1 // pred_region
      _
    $region13: #{actor_net_forward.1} parent=1 // pred_fallthru
      _
    // Predicated region
    $region14: #{actor_net_forward.1} parent=1 // pred_check
      _
    $region15: #{actor_net_forward.1} parent=1 // pred_check_branch
      %18 = sbr.rel (0) target = $region17
    $region16: #{actor_net_forward.1} parent=1 // pred_region
      _
    $region17: #{actor_net_forward.1} parent=1 // pred_fallthru
      _
    // Predicated region
    $region18: #{actor_net_forward.1} parent=1 // pred_check
      _
    $region19: #{actor_net_forward.1} parent=1 // pred_check_branch
      %20 = sbr.rel (0) target = $region21
    $region20: #{actor_net_forward.1} parent=1 // pred_region
      _
    $region21: #{actor_net_forward.1} parent=1 // pred_fallthru
      _
    %v21 = vld [vmem:[%s0] sm:$0xff]
    %v22 = vld [vmem:[%s1] sm:$0x7]
    %24 = vset.pattern.permute.xlu0 0
    %25 = vperm.xlu0 %24, %v21
    %v26 = vpop.permute.xlu0 %25
    %v28 = vperm.slane %v22, 0
    %v29 = vmul.f32 %v26, %v28
    %30 = vset.pattern.permute.xlu0 1
    %31 = vperm.xlu0 %30, %v21
    %v32 = vpop.permute.xlu0 %31
    %v34 = vperm.slane %v22, 1
    %v35 = vmul.f32 %v32, %v34
    %v36 = vadd.f32 %v29, %v35
    %37 = vset.pattern.permute.xlu0 2
    %38 = vperm.xlu0 %37, %v21
    %v39 = vpop.permute.xlu0 %38
    %v41 = vperm.slane %v22, 2
    %v42 = vmul.f32 %v39, %v41
    %v43 = vadd.f32 %v36, %v42
    %v44 = vld [vmem:[%s2] sm:$0x1]
    %v46 = vperm.slane %v44, 0
    %v48 = vadd.f32 %v43, %v46
    %v49 = vmax.f32 %v48, 0.0
    %v50 = vld [vmem:[%s3] sm:$0xff]
    %v51 = vld [vmem:[%s3 + $0x8] sm:$0xff]
    %v52 = vld [vmem:[%s3 + $0x10] sm:$0xff]
    %v53 = vld [vmem:[%s3 + $0x18] sm:$0xff]
    %55 = vset.pattern.permute.xlu0 0
    %56 = vperm.xlu0 %55, %v49
    %v57 = vpop.permute.xlu0 %56
    %v59 = vperm.slane %v50, 0
    %v60 = vmul.f32 %v57, %v59
    %61 = vset.pattern.permute.xlu0 1
    %62 = vperm.xlu0 %61, %v49
    %v63 = vpop.permute.xlu0 %62
    %v65 = vperm.slane %v50, 1
    %v66 = vmul.f32 %v63, %v65
    %v67 = vadd.f32 %v60, %v66
    %68 = vset.pattern.permute.xlu0 2
    %69 = vperm.xlu0 %68, %v49
    %v70 = vpop.permute.xlu0 %69
    %v72 = vperm.slane %v50, 2
    %v73 = vmul.f32 %v70, %v72
    %v74 = vadd.f32 %v67, %v73
    %75 = vset.pattern.permute.xlu0 3
    %76 = vperm.xlu0 %75, %v49
    %v77 = vpop.permute.xlu0 %76
    %v79 = vperm.slane %v50, 3
    %v80 = vmul.f32 %v77, %v79
    %v81 = vadd.f32 %v74, %v80
    %82 = vset.pattern.permute.xlu0 4
    %83 = vperm.xlu0 %82, %v49
    %v84 = vpop.permute.xlu0 %83
    %v86 = vperm.slane %v50, 4
    %v87 = vmul.f32 %v84, %v86
    %v88 = vadd.f32 %v81, %v87
    %89 = vset.pattern.permute.xlu0 5
    %90 = vperm.xlu0 %89, %v49
    %v91 = vpop.permute.xlu0 %90
    %v93 = vperm.slane %v50, 5
    %v94 = vmul.f32 %v91, %v93
    %v95 = vadd.f32 %v88, %v94
    %96 = vset.pattern.permute.xlu0 6
    %97 = vperm.xlu0 %96, %v49
    %v98 = vpop.permute.xlu0 %97
    %v100 = vperm.slane %v50, 6
    %v101 = vmul.f32 %v98, %v100
    %v102 = vadd.f32 %v95, %v101
    %103 = vset.pattern.permute.xlu0 7
    %104 = vperm.xlu0 %103, %v49
    %v105 = vpop.permute.xlu0 %104
    %v107 = vperm.slane %v50, 7
    %v108 = vmul.f32 %v105, %v107
    %v109 = vadd.f32 %v102, %v108
    %110 = vset.pattern.permute.xlu0 8
    %111 = vperm.xlu0 %110, %v49
    %v112 = vpop.permute.xlu0 %111
    %v114 = vperm.slane %v51, 0
    %v115 = vmul.f32 %v112, %v114
    %v116 = vadd.f32 %v109, %v115
    %117 = vset.pattern.permute.xlu0 9
    %118 = vperm.xlu0 %117, %v49
    %v119 = vpop.permute.xlu0 %118
    %v121 = vperm.slane %v51, 1
    %v122 = vmul.f32 %v119, %v121
    %v123 = vadd.f32 %v116, %v122
    %124 = vset.pattern.permute.xlu0 10
    %125 = vperm.xlu0 %124, %v49
    %v126 = vpop.permute.xlu0 %125
    %v128 = vperm.slane %v51, 2
    %v129 = vmul.f32 %v126, %v128
    %v130 = vadd.f32 %v123, %v129
    %131 = vset.pattern.permute.xlu0 11
    %132 = vperm.xlu0 %131, %v49
    %v133 = vpop.permute.xlu0 %132
    %v135 = vperm.slane %v51, 3
    %v136 = vmul.f32 %v133, %v135
    %v137 = vadd.f32 %v130, %v136
    %138 = vset.pattern.permute.xlu0 12
    %139 = vperm.xlu0 %138, %v49
    %v140 = vpop.permute.xlu0 %139
    %v142 = vperm.slane %v51, 4
    %v143 = vmul.f32 %v140, %v142
    %v144 = vadd.f32 %v137, %v143
    %145 = vset.pattern.permute.xlu0 13
    %146 = vperm.xlu0 %145, %v49
    %v147 = vpop.permute.xlu0 %146
    %v149 = vperm.slane %v51, 5
    %v150 = vmul.f32 %v147, %v149
    %v151 = vadd.f32 %v144, %v150
    %152 = vset.pattern.permute.xlu0 14
    %153 = vperm.xlu0 %152, %v49
    %v154 = vpop.permute.xlu0 %153
    %v156 = vperm.slane %v51, 6
    %v157 = vmul.f32 %v154, %v156
    %v158 = vadd.f32 %v151, %v157
    %159 = vset.pattern.permute.xlu0 15
    %160 = vperm.xlu0 %159, %v49
    %v161 = vpop.permute.xlu0 %160
    %v163 = vperm.slane %v51, 7
    %v164 = vmul.f32 %v161, %v163
    %v165 = vadd.f32 %v158, %v164
    %166 = vset.pattern.permute.xlu0 16
    %167 = vperm.xlu0 %166, %v49
    %v168 = vpop.permute.xlu0 %167
    %v170 = vperm.slane %v52, 0
    %v171 = vmul.f32 %v168, %v170
    %v172 = vadd.f32 %v165, %v171
    %173 = vset.pattern.permute.xlu0 17
    %174 = vperm.xlu0 %173, %v49
    %v175 = vpop.permute.xlu0 %174
    %v177 = vperm.slane %v52, 1
    %v178 = vmul.f32 %v175, %v177
    %v179 = vadd.f32 %v172, %v178
    %180 = vset.pattern.permute.xlu0 18
    %181 = vperm.xlu0 %180, %v49
    %v182 = vpop.permute.xlu0 %181
    %v184 = vperm.slane %v52, 2
    %v185 = vmul.f32 %v182, %v184
    %v186 = vadd.f32 %v179, %v185
    %187 = vset.pattern.permute.xlu0 19
    %188 = vperm.xlu0 %187, %v49
    %v189 = vpop.permute.xlu0 %188
    %v191 = vperm.slane %v52, 3
    %v192 = vmul.f32 %v189, %v191
    %v193 = vadd.f32 %v186, %v192
    %194 = vset.pattern.permute.xlu0 20
    %195 = vperm.xlu0 %194, %v49
    %v196 = vpop.permute.xlu0 %195
    %v198 = vperm.slane %v52, 4
    %v199 = vmul.f32 %v196, %v198
    %v200 = vadd.f32 %v193, %v199
    %201 = vset.pattern.permute.xlu0 21
    %202 = vperm.xlu0 %201, %v49
    %v203 = vpop.permute.xlu0 %202
    %v205 = vperm.slane %v52, 5
    %v206 = vmul.f32 %v203, %v205
    %v207 = vadd.f32 %v200, %v206
    %208 = vset.pattern.permute.xlu0 22
    %209 = vperm.xlu0 %208, %v49
    %v210 = vpop.permute.xlu0 %209
    %v212 = vperm.slane %v52, 6
    %v213 = vmul.f32 %v210, %v212
    %v214 = vadd.f32 %v207, %v213
    %215 = vset.pattern.permute.xlu0 23
    %216 = vperm.xlu0 %215, %v49
    %v217 = vpop.permute.xlu0 %216
    %v219 = vperm.slane %v52, 7
    %v220 = vmul.f32 %v217, %v219
    %v221 = vadd.f32 %v214, %v220
    %222 = vset.pattern.permute.xlu0 24
    %223 = vperm.xlu0 %222, %v49
    %v224 = vpop.permute.xlu0 %223
    %v226 = vperm.slane %v53, 0
    %v227 = vmul.f32 %v224, %v226
    %v228 = vadd.f32 %v221, %v227
    %229 = vset.pattern.permute.xlu0 25
    %230 = vperm.xlu0 %229, %v49
    %v231 = vpop.permute.xlu0 %230
    %v233 = vperm.slane %v53, 1
    %v234 = vmul.f32 %v231, %v233
    %v235 = vadd.f32 %v228, %v234
    %236 = vset.pattern.permute.xlu0 26
    %237 = vperm.xlu0 %236, %v49
    %v238 = vpop.permute.xlu0 %237
    %v240 = vperm.slane %v53, 2
    %v241 = vmul.f32 %v238, %v240
    %v242 = vadd.f32 %v235, %v241
    %243 = vset.pattern.permute.xlu0 27
    %244 = vperm.xlu0 %243, %v49
    %v245 = vpop.permute.xlu0 %244
    %v247 = vperm.slane %v53, 3
    %v248 = vmul.f32 %v245, %v247
    %v249 = vadd.f32 %v242, %v248
    %250 = vset.pattern.permute.xlu0 28
    %251 = vperm.xlu0 %250, %v49
    %v252 = vpop.permute.xlu0 %251
    %v254 = vperm.slane %v53, 4
    %v255 = vmul.f32 %v252, %v254
    %v256 = vadd.f32 %v249, %v255
    %257 = vset.pattern.permute.xlu0 29
    %258 = vperm.xlu0 %257, %v49
    %v259 = vpop.permute.xlu0 %258
    %v261 = vperm.slane %v53, 5
    %v262 = vmul.f32 %v259, %v261
    %v263 = vadd.f32 %v256, %v262
    %264 = vset.pattern.permute.xlu0 30
    %265 = vperm.xlu0 %264, %v49
    %v266 = vpop.permute.xlu0 %265
    %v268 = vperm.slane %v53, 6
    %v269 = vmul.f32 %v266, %v268
    %v270 = vadd.f32 %v263, %v269
    %271 = vset.pattern.permute.xlu0 31
    %272 = vperm.xlu0 %271, %v49
    %v273 = vpop.permute.xlu0 %272
    %v275 = vperm.slane %v53, 7
    %v276 = vmul.f32 %v273, %v275
    %v277 = vadd.f32 %v270, %v276
    %v278 = vld [vmem:[%s4] sm:$0x1]
    %v280 = vperm.slane %v278, 0
    %v282 = vadd.f32 %v277, %v280
    %283 = vmax.xlane.f32.xlu0 %v282
    %v284 = vpop.xlane.xlu0 %283
    %v285 = vsub.f32 %v282, %v284
    %v286 = vmul.f32 %v285, 1.442695
    %v287 = vpow.pop %v286
    %288 = vadd.xlane.f32.xlu0 %v287
    %v289 = vpop.xlane.xlu0 %288
    %v290 = vrcp.pop %v289
    %v291 = vmul.f32 %v289, %v290
    %v292 = vsub.f32 1.0, %v291
    %v293 = vmul.f32 %v290, %v292
    %v294 = vadd.f32 %v290, %v293
    %vm295 = vweird.f32 %v289
    %vm296 = vweird.f32 %v290
    %vm297 = vmor %vm295, %vm296
    %v298 = vsel %vm297, %v290, %v294
    %v299 = vand.u32 2147483647, %v289
    %vm300 = vcmp.eq.f32.partialorder %v299, 8.507059e+37
    %v301 = vand.u32 %v289, 2147483648
    %v302 = vor.u32 1.1754944e-38, %v301
    %v303 = vsel %vm300, %v302, %v298
    %v304 = vmul.f32 %v287, %v303
    %305 = vst [vmem:[#allocation2] sm:$0xff] %v304
    // Predicated region
    $region22: #{actor_net_forward.1} parent=1 // pred_check
      _
    $region23: #{actor_net_forward.1} parent=1 // pred_check_branch
      %307 = sbr.rel (0) target = $region25
    $region24: #{actor_net_forward.1} parent=1 // pred_region
      %309 = vsyncadd [#allocation3], 0
      %s311 = sshll.u32 [#allocation2], 4
      %s312 = int_to_ptr.vmem [resolvable:$true] %s311
      %s313 = sshll.u32 %s5, 4
      %s314 = int_to_ptr.hbm [resolvable:$true] %s313
      %316 = dma.vmem_to_hbm [thread:$0]  %s312, 128, %s314, [#allocation3]
    $region25: #{actor_net_forward.1} parent=1 // pred_fallthru
      _
    // Predicated region
    $region26: #{actor_net_forward.1} parent=1 // pred_check
      _
    $region27: #{actor_net_forward.1} parent=1 // pred_check_branch
      %318 = sbr.rel (0) target = $region29
    $region28: #{actor_net_forward.1} parent=1 // pred_region
      %320 = dma.done [#allocation3], 128
    $region29: #{actor_net_forward.1} parent=1 // pred_fallthru
      _
    %321 = vsyncpa [#allocation3], 1

</llo_original>
